<compile_context>
chip_gen: v7x
topology: tpu7x:2x2x1
jax: 0.10.0
libtpu: 0.0.40
codegen_flags: <defaults>
</compile_context>

<pallas_src>
import jax
import jax.numpy as jnp
from jax import lax
from jax.experimental import pallas as pl
from jax.experimental.pallas import tpu as pltpu


def rnn_fc_kernel(x_ref, wih_ref, whh_ref, b_ref, wfc_ref, bfc_ref, out_ref):
    S, H = x_ref.shape

    # Hoisted input projection for ALL timesteps: single batched MXU matmul
    # plus the fused bias (broadcast (1,H) over (S,H)).
    xw = (jnp.dot(x_ref[...], wih_ref[...], preferred_element_type=jnp.float32)
          + b_ref[...])                                    # (S, H)

    whh = whh_ref[...]                                     # (H, H), loop-invariant

    # h_0 = 0 (PyTorch default)  =>  h_1 = tanh(xw[0]) with no matmul needed.
    h = jnp.tanh(xw[0:1, :])                               # (1, H), lives in vregs

    # Fully unrolled recurrence: only the h @ W_hh^T matmul + tanh remain on
    # the serial dependence chain per step.
    for t in range(1, S):
        h = jnp.tanh(xw[t:t + 1, :]
                     + jnp.dot(h, whh, preferred_element_type=jnp.float32))

    # fc on the last hidden state == fc(output)[-1] for a single-layer RNN.
    out_ref[...] = (jnp.dot(h, wfc_ref[...], preferred_element_type=jnp.float32)
                    + bfc_ref[...])


def simple_rnn_forward(tokens, params):
    """tokens: (S,) int32 indices. Returns (output_size,) float32."""
    emb = params["embedding"]          # (V, H)
    w_ih = params["w_ih"]              # (H, H)  PyTorch layout (out, in)
    w_hh = params["w_hh"]              # (H, H)
    b_ih = params["b_ih"]              # (H,)
    b_hh = params["b_hh"]              # (H,)
    w_fc = params["w_fc"]              # (O, H)
    b_fc = params["b_fc"]              # (O,)

    H = emb.shape[1]
    O = w_fc.shape[0]

    # Glue: embedding lookup (gather) and weight pre-transposition stay in JAX.
    x = jnp.take(emb, tokens, axis=0).astype(jnp.float32)    # (S, H)
    wih_t = w_ih.T                                            # (H, H)
    whh_t = w_hh.T                                            # (H, H)
    b = (b_ih + b_hh).reshape(1, H)                           # (1, H)
    wfc_t = w_fc.T                                            # (H, O)
    bfc = b_fc.reshape(1, O)                                  # (1, O)

    vmem_spec = pl.BlockSpec(memory_space=pltpu.MemorySpace.VMEM)
    out = pl.pallas_call(
        rnn_fc_kernel,
        out_shape=jax.ShapeDtypeStruct((1, O), jnp.float32),
        in_specs=[vmem_spec] * 6,
        out_specs=vmem_spec,
    )(x, wih_t, whh_t, b, wfc_t, bfc)
    return out[0]


def init_params(key, input_size, hidden_size, output_size):
    ks = jax.random.split(key, 7)
    H, V, O = hidden_size, input_size, output_size
    bound_rnn = 1.0 / jnp.sqrt(H)
    bound_fc = 1.0 / jnp.sqrt(H)
    return {
        "embedding": jax.random.normal(ks[0], (V, H), jnp.float32),
        "w_ih": jax.random.uniform(ks[1], (H, H), jnp.float32, -bound_rnn, bound_rnn),
        "w_hh": jax.random.uniform(ks[2], (H, H), jnp.float32, -bound_rnn, bound_rnn),
        "b_ih": jax.random.uniform(ks[3], (H,), jnp.float32, -bound_rnn, bound_rnn),
        "b_hh": jax.random.uniform(ks[4], (H,), jnp.float32, -bound_rnn, bound_rnn),
        "w_fc": jax.random.uniform(ks[5], (O, H), jnp.float32, -bound_fc, bound_fc),
        "b_fc": jax.random.uniform(ks[6], (O,), jnp.float32, -bound_fc, bound_fc),
    }


def reference_forward(tokens, params):
    """Pure-JAX reference mirroring the PyTorch forward."""
    x = jnp.take(params["embedding"], tokens, axis=0)          # (S, H)
    H = x.shape[1]
    h = jnp.zeros((H,), jnp.float32)

    def step(h, x_t):
        h_new = jnp.tanh(params["w_ih"] @ x_t + params["b_ih"]
                         + params["w_hh"] @ h + params["b_hh"])
        return h_new, h_new

    h_last, _ = lax.scan(step, h, x)
    return params["w_fc"] @ h_last + params["b_fc"]            # (O,)


if __name__ == "__main__":
    input_size = 16     # vocab
    hidden_size = 32
    output_size = 8
    seq_len = 8

    key = jax.random.PRNGKey(0)
    k_tok, k_param = jax.random.split(key)
    tokens = jax.random.randint(k_tok, (seq_len,), 0, input_size, dtype=jnp.int32)
    params = init_params(k_param, input_size, hidden_size, output_size)

    out = simple_rnn_forward(tokens, params)
    out = jax.block_until_ready(out)

    ref = reference_forward(tokens, params)
    assert out.shape == (output_size,)
    assert jnp.allclose(out, ref, atol=1e-5, rtol=1e-5), (out, ref)

    print("KERNEL_OK")
</pallas_src>

<mosaic_0001>
module attributes {stable_mosaic.version = 11 : i64} {
  func.func @rnn_fc_kernel(%arg0: memref<8x32xf32, #tpu.memory_space<vmem>>, %arg1: memref<32x32xf32, #tpu.memory_space<vmem>>, %arg2: memref<32x32xf32, #tpu.memory_space<vmem>>, %arg3: memref<1x32xf32, #tpu.memory_space<vmem>>, %arg4: memref<32x8xf32, #tpu.memory_space<vmem>>, %arg5: memref<1x8xf32, #tpu.memory_space<vmem>>, %arg6: memref<1x8xf32, #tpu.memory_space<vmem>>) attributes {dimension_semantics = [], scalar_prefetch = 0 : i64, scratch_operands = 0 : i64, tpu.core_type = #tpu.core_type<tc>} {
    %c0 = arith.constant 0 : index
    %c0_0 = arith.constant 0 : index
    %0 = vector.load %arg0[%c0, %c0_0] : memref<8x32xf32, #tpu.memory_space<vmem>>, vector<8x32xf32>
    %c0_1 = arith.constant 0 : index
    %c0_2 = arith.constant 0 : index
    %1 = vector.load %arg1[%c0_1, %c0_2] : memref<32x32xf32, #tpu.memory_space<vmem>>, vector<32x32xf32>
    %cst = arith.constant dense<0.000000e+00> : vector<8x32xf32>
    %2 = tpu.matmul %0, %1, %cst {dimension_numbers = #tpu.dot_dimension_numbers<[1], [0], [0], [1], [0, 0, 1, 1], [], []>} : vector<8x32xf32>, vector<32x32xf32>, vector<8x32xf32> -> vector<8x32xf32>
    %c0_3 = arith.constant 0 : index
    %c0_4 = arith.constant 0 : index
    %3 = vector.load %arg3[%c0_3, %c0_4] : memref<1x32xf32, #tpu.memory_space<vmem>>, vector<1x32xf32>
    %4 = vector.broadcast %3 : vector<1x32xf32> to vector<8x32xf32>
    %5 = arith.addf %2, %4 : vector<8x32xf32>
    %c0_5 = arith.constant 0 : index
    %c0_6 = arith.constant 0 : index
    %6 = vector.load %arg2[%c0_5, %c0_6] : memref<32x32xf32, #tpu.memory_space<vmem>>, vector<32x32xf32>
    %7 = vector.extract_strided_slice %5 {offsets = [0, 0], sizes = [1, 32], strides = [1, 1]} : vector<8x32xf32> to vector<1x32xf32>
    %8 = math.tanh %7 : vector<1x32xf32>
    %9 = vector.extract_strided_slice %5 {offsets = [1, 0], sizes = [1, 32], strides = [1, 1]} : vector<8x32xf32> to vector<1x32xf32>
    %cst_7 = arith.constant dense<0.000000e+00> : vector<1x32xf32>
    %10 = tpu.matmul %8, %6, %cst_7 {dimension_numbers = #tpu.dot_dimension_numbers<[1], [0], [0], [1], [0, 0, 1, 1], [], []>} : vector<1x32xf32>, vector<32x32xf32>, vector<1x32xf32> -> vector<1x32xf32>
    %11 = arith.addf %9, %10 : vector<1x32xf32>
    %12 = math.tanh %11 : vector<1x32xf32>
    %13 = vector.extract_strided_slice %5 {offsets = [2, 0], sizes = [1, 32], strides = [1, 1]} : vector<8x32xf32> to vector<1x32xf32>
    %cst_8 = arith.constant dense<0.000000e+00> : vector<1x32xf32>
    %14 = tpu.matmul %12, %6, %cst_8 {dimension_numbers = #tpu.dot_dimension_numbers<[1], [0], [0], [1], [0, 0, 1, 1], [], []>} : vector<1x32xf32>, vector<32x32xf32>, vector<1x32xf32> -> vector<1x32xf32>
    %15 = arith.addf %13, %14 : vector<1x32xf32>
    %16 = math.tanh %15 : vector<1x32xf32>
    %17 = vector.extract_strided_slice %5 {offsets = [3, 0], sizes = [1, 32], strides = [1, 1]} : vector<8x32xf32> to vector<1x32xf32>
    %cst_9 = arith.constant dense<0.000000e+00> : vector<1x32xf32>
    %18 = tpu.matmul %16, %6, %cst_9 {dimension_numbers = #tpu.dot_dimension_numbers<[1], [0], [0], [1], [0, 0, 1, 1], [], []>} : vector<1x32xf32>, vector<32x32xf32>, vector<1x32xf32> -> vector<1x32xf32>
    %19 = arith.addf %17, %18 : vector<1x32xf32>
    %20 = math.tanh %19 : vector<1x32xf32>
    %21 = vector.extract_strided_slice %5 {offsets = [4, 0], sizes = [1, 32], strides = [1, 1]} : vector<8x32xf32> to vector<1x32xf32>
    %cst_10 = arith.constant dense<0.000000e+00> : vector<1x32xf32>
    %22 = tpu.matmul %20, %6, %cst_10 {dimension_numbers = #tpu.dot_dimension_numbers<[1], [0], [0], [1], [0, 0, 1, 1], [], []>} : vector<1x32xf32>, vector<32x32xf32>, vector<1x32xf32> -> vector<1x32xf32>
    %23 = arith.addf %21, %22 : vector<1x32xf32>
    %24 = math.tanh %23 : vector<1x32xf32>
    %25 = vector.extract_strided_slice %5 {offsets = [5, 0], sizes = [1, 32], strides = [1, 1]} : vector<8x32xf32> to vector<1x32xf32>
    %cst_11 = arith.constant dense<0.000000e+00> : vector<1x32xf32>
    %26 = tpu.matmul %24, %6, %cst_11 {dimension_numbers = #tpu.dot_dimension_numbers<[1], [0], [0], [1], [0, 0, 1, 1], [], []>} : vector<1x32xf32>, vector<32x32xf32>, vector<1x32xf32> -> vector<1x32xf32>
    %27 = arith.addf %25, %26 : vector<1x32xf32>
    %28 = math.tanh %27 : vector<1x32xf32>
    %29 = vector.extract_strided_slice %5 {offsets = [6, 0], sizes = [1, 32], strides = [1, 1]} : vector<8x32xf32> to vector<1x32xf32>
    %cst_12 = arith.constant dense<0.000000e+00> : vector<1x32xf32>
    %30 = tpu.matmul %28, %6, %cst_12 {dimension_numbers = #tpu.dot_dimension_numbers<[1], [0], [0], [1], [0, 0, 1, 1], [], []>} : vector<1x32xf32>, vector<32x32xf32>, vector<1x32xf32> -> vector<1x32xf32>
    %31 = arith.addf %29, %30 : vector<1x32xf32>
    %32 = math.tanh %31 : vector<1x32xf32>
    %33 = vector.extract_strided_slice %5 {offsets = [7, 0], sizes = [1, 32], strides = [1, 1]} : vector<8x32xf32> to vector<1x32xf32>
    %cst_13 = arith.constant dense<0.000000e+00> : vector<1x32xf32>
    %34 = tpu.matmul %32, %6, %cst_13 {dimension_numbers = #tpu.dot_dimension_numbers<[1], [0], [0], [1], [0, 0, 1, 1], [], []>} : vector<1x32xf32>, vector<32x32xf32>, vector<1x32xf32> -> vector<1x32xf32>
    %35 = arith.addf %33, %34 : vector<1x32xf32>
    %36 = math.tanh %35 : vector<1x32xf32>
    %c0_14 = arith.constant 0 : index
    %c0_15 = arith.constant 0 : index
    %37 = vector.load %arg4[%c0_14, %c0_15] : memref<32x8xf32, #tpu.memory_space<vmem>>, vector<32x8xf32>
    %cst_16 = arith.constant dense<0.000000e+00> : vector<1x8xf32>
    %38 = tpu.matmul %36, %37, %cst_16 {dimension_numbers = #tpu.dot_dimension_numbers<[1], [0], [0], [1], [0, 0, 1, 1], [], []>} : vector<1x32xf32>, vector<32x8xf32>, vector<1x8xf32> -> vector<1x8xf32>
    %c0_17 = arith.constant 0 : index
    %c0_18 = arith.constant 0 : index
    %39 = vector.load %arg5[%c0_17, %c0_18] : memref<1x8xf32, #tpu.memory_space<vmem>>, vector<1x8xf32>
    %40 = arith.addf %38, %39 : vector<1x8xf32>
    %c0_19 = arith.constant 0 : index
    %c0_20 = arith.constant 0 : index
    %41 = vector.load %arg6[%c0_19, %c0_20] : memref<1x8xf32, #tpu.memory_space<vmem>>, vector<1x8xf32>
    tpu.vector_store %arg6[%c0_19, %c0_20], %40 {strides = array<i32>} : memref<1x8xf32, #tpu.memory_space<vmem>>, vector<1x8xf32>,
    return
  }
}

</mosaic_0001>

<llo_original>
// kernel: tpu_custom_call.1
$region0: #{tpu_custom_call.1}
  #allocation0 [shape = 'u32[]', space=smem, size = 0x4, offset = 0x4, fixed_abs, tag = 'smem constant byte address 0x4 - core index']
  #allocation1 [shape = 'u32[144,128]{1,0:T(1,128)}', space=vmem, size = 0x12000, scoped, tag = 'internal scratch']
  %s0 = inlined_call_operand.vmem [shape: f32[8,32], index: 0, kind: input, shape index: {}]
  %s1 = inlined_call_operand.vmem [shape: f32[32,32], index: 1, kind: input, shape index: {}]
  %s2 = inlined_call_operand.hbm [shape: f32[32,32], index: 2, kind: input, shape index: {}]
  %s3 = inlined_call_operand.vmem [shape: f32[1,32], index: 3, kind: input, shape index: {}]
  %s4 = inlined_call_operand.vmem [shape: f32[32,8], index: 4, kind: input, shape index: {}]
  %s5 = inlined_call_operand.vmem [shape: f32[1,8], index: 5, kind: input, shape index: {}]
  %s6 = inlined_call_operand.hbm [shape: f32[1,8], index: 6, kind: output, shape index: {}]
  %s7 = sld [smem:[#allocation0]]
  $region38: #{tpu_custom_call.1} parent=0
    _
  %s9 = ssub.s32 1, %s7
  %s10 = scalar_select 0, %s9, %s7
  $region1: #{tpu_custom_call.1} parent=0
    #allocation2 [shape = 'u8[16384]{0}', space=vmem, size = 0x4000, scoped, tag = 'input window, operand 2, single buffered']
    #allocation3 [shape = 's32[1]{0}', space=sflag, size = 0x4, scoped, tag = 'scoped memory for tpu_custom_call.1']
    #allocation4 [shape = 's32[1]{0}', space=sflag, size = 0x4, scoped, tag = 'scoped memory for tpu_custom_call.1']
    #allocation5 [shape = 'u8[512]{0}', space=vmem, size = 0x400, scoped, tag = 'output window, operand 0, single buffered']
    %11 = vsyncpa [#allocation3], 0
    %12 = vsyncpa [#allocation4], 0
    // Predicated region
    $region2: #{tpu_custom_call.1} parent=1 // pred_check
      _
    $region3: #{tpu_custom_call.1} parent=1 // pred_check_branch
      %14 = sbr.rel (0) target = $region5
    $region4: #{tpu_custom_call.1} parent=1 // pred_region
      _
    $region5: #{tpu_custom_call.1} parent=1 // pred_fallthru
      _
    // Predicated region
    $region6: #{tpu_custom_call.1} parent=1 // pred_check
      _
    $region7: #{tpu_custom_call.1} parent=1 // pred_check_branch
      %16 = sbr.rel (0) target = $region9
    $region8: #{tpu_custom_call.1} parent=1 // pred_region
      _
    $region9: #{tpu_custom_call.1} parent=1 // pred_fallthru
      _
    // Predicated region
    $region10: #{tpu_custom_call.1} parent=1 // pred_check
      _
    $region11: #{tpu_custom_call.1} parent=1 // pred_check_branch
      %18 = sbr.rel (0) target = $region13
    $region12: #{tpu_custom_call.1} parent=1 // pred_region
      %s20 = ssub.s32 512, 512
      %21 = vsyncadd [#allocation3], %s20
      %s22 = sshll.u32 [#allocation2], 4
      %s23 = int_to_ptr.vmem [resolvable:$true] %s22
      %28 = dma.hbm_to_vmem [thread:$0]  %s2, 512, %s23, [#allocation3], 128, 128, 8
    $region13: #{tpu_custom_call.1} parent=1 // pred_fallthru
      _
    // Predicated region
    $region14: #{tpu_custom_call.1} parent=1 // pred_check
      _
    $region15: #{tpu_custom_call.1} parent=1 // pred_check_branch
      %30 = sbr.rel (0) target = $region17
    $region16: #{tpu_custom_call.1} parent=1 // pred_region
      _
    $region17: #{tpu_custom_call.1} parent=1 // pred_fallthru
      _
    // Predicated region
    $region18: #{tpu_custom_call.1} parent=1 // pred_check
      _
    $region19: #{tpu_custom_call.1} parent=1 // pred_check_branch
      %32 = sbr.rel (0) target = $region21
    $region20: #{tpu_custom_call.1} parent=1 // pred_region
      _
    $region21: #{tpu_custom_call.1} parent=1 // pred_fallthru
      _
    // Predicated region
    $region22: #{tpu_custom_call.1} parent=1 // pred_check
      _
    $region23: #{tpu_custom_call.1} parent=1 // pred_check_branch
      %34 = sbr.rel (0) target = $region25
    $region24: #{tpu_custom_call.1} parent=1 // pred_region
      _
    $region25: #{tpu_custom_call.1} parent=1 // pred_fallthru
      _
    // Predicated region
    $region26: #{tpu_custom_call.1} parent=1 // pred_check
      _
    $region27: #{tpu_custom_call.1} parent=1 // pred_check_branch
      %36 = sbr.rel (0) target = $region29
    $region28: #{tpu_custom_call.1} parent=1 // pred_region
      %37 = dma.done [#allocation3], 512
    $region29: #{tpu_custom_call.1} parent=1 // pred_fallthru
      _
    %v38 = vld [vmem:[%s0] sm:$0xff]
    %v39 = vld [vmem:[%s1] sm:$0xff]
    %v40 = vld [vmem:[%s1 + $0x8] sm:$0xff]
    %v41 = vld [vmem:[%s1 + $0x10] sm:$0xff]
    %v42 = vld [vmem:[%s1 + $0x18] sm:$0xff]
    %v43 = vld [vmem:[%s3] sm:$0x1]
    %v45 = vlaneseq
    %v46 = vshrl.u32 %v45, 7
    %v47 = vsub.s32 0, %v46
    %v48 = vrot.slane %v43, %v47
    %vm50 = vcmask 261120
    %v52 = vsel %vm50, %v38, 0
    %54 = vmatprep.subr.mxu0 0.0
    %55 = vmatpush1.msra.mxu0 %v39
    %56 = vmatprep.subr.mxu0 0.0
    %57 = vmatpush1.msra.mxu0 %v40
    %58 = vmatprep.subr.mxu0 0.0
    %59 = vmatpush1.msra.mxu0 %v41
    %60 = vmatprep.subr.mxu0 0.0
    %61 = vmatpush1.msra.mxu0 %v42
    %62 = vmatprep.subr.mxu0 0.0
    %63 = vmatpush1.msra.mxu0 0.0
    %64 = vmatprep.subr.mxu0 0.0
    %65 = vmatpush1.msra.mxu0 0.0
    %66 = vmatprep.subr.mxu0 0.0
    %67 = vmatpush1.msra.mxu0 0.0
    %68 = vmatprep.subr.mxu0 0.0
    %69 = vmatpush1.msra.mxu0 0.0
    %70 = vmatprep.subr.mxu0 0.0
    %71 = vmatpush1.msra.mxu0 0.0
    %72 = vmatprep.subr.mxu0 0.0
    %73 = vmatpush1.msra.mxu0 0.0
    %74 = vmatprep.subr.mxu0 0.0
    %75 = vmatpush1.msra.mxu0 0.0
    %76 = vmatprep.subr.mxu0 0.0
    %77 = vmatpush1.msra.mxu0 0.0
    %78 = vmatprep.subr.mxu0 0.0
    %79 = vmatpush1.msra.mxu0 0.0
    %80 = vmatprep.subr.mxu0 0.0
    %81 = vmatpush1.msra.mxu0 0.0
    %82 = vmatprep.subr.mxu0 0.0
    %83 = vmatpush1.msra.mxu0 0.0
    %84 = vmatprep.subr.mxu0 0.0
    %85 = vmatpush1.msra.mxu0 0.0
    %86 = vmatprep.subr.mxu0 0.0
    %87 = vmatpush1.msra.mxu0 0.0
    %88 = vmatprep.subr.mxu0 0.0
    %89 = vmatpush1.msra.mxu0 0.0
    %90 = vmatprep.subr.mxu0 0.0
    %91 = vmatpush1.msra.mxu0 0.0
    %92 = vmatprep.subr.mxu0 0.0
    %93 = vmatpush1.msra.mxu0 0.0
    %94 = vmatprep.subr.mxu0 0.0
    %95 = vmatpush1.msra.mxu0 0.0
    %96 = vmatprep.subr.mxu0 0.0
    %97 = vmatpush1.msra.mxu0 0.0
    %98 = vmatprep.subr.mxu0 0.0
    %99 = vmatpush1.msra.mxu0 0.0
    %100 = vmatprep.subr.mxu0 0.0
    %101 = vmatpush1.msra.mxu0 0.0
    %102 = vmatprep.subr.mxu0 0.0
    %103 = vmatpush1.msra.mxu0 0.0
    %104 = vmatprep.subr.mxu0 0.0
    %105 = vmatpush1.msra.mxu0 0.0
    %106 = vmatprep.subr.mxu0 0.0
    %107 = vmatpush1.msra.mxu0 0.0
    %108 = vmatprep.subr.mxu0 0.0
    %109 = vmatpush1.msra.mxu0 0.0
    %110 = vmatprep.subr.mxu0 0.0
    %111 = vmatpush1.msra.mxu0 0.0
    %112 = vmatprep.subr.mxu0 0.0
    %113 = vmatpush1.msra.mxu0 0.0
    %114 = vmatprep.subr.mxu0 0.0
    %115 = vmatpush1.msra.mxu0 0.0
    %116 = vmatprep.subr.mxu0 0.0
    %117 = vmatpush1.msra.mxu0 0.0
    %118 = vmatprep.mubr.f32.mxu0 0.0
    %119 = vmatmul.mubr.f32.gmra.mrb[0].mxu0 %v52
    %v120 = vpop.f32.mrb[0].mxu0
    %v121 = vadd.f32 %v48, %v120
    %v122 = vpop.f32.mrb[0].mxu0
    %123 = vdwg.mxu0
    %v124 = vld [vmem:[#allocation2] sm:$0xff]
    %v125 = vld [vmem:[#allocation2 + $0x8] sm:$0xff]
    %v126 = vld [vmem:[#allocation2 + $0x10] sm:$0xff]
    %v127 = vld [vmem:[#allocation2 + $0x18] sm:$0xff]
    %v128 = vtanh.pop %v121
    %v130 = vsel %vm50, %v128, 0
    %132 = vmatprep.subr.mxu0 0.0
    %133 = vmatpush1.msra.mxu0 %v124
    %134 = vmatprep.subr.mxu0 0.0
    %135 = vmatpush1.msra.mxu0 %v125
    %136 = vmatprep.subr.mxu0 0.0
    %137 = vmatpush1.msra.mxu0 %v126
    %138 = vmatprep.subr.mxu0 0.0
    %139 = vmatpush1.msra.mxu0 %v127
    %140 = vmatprep.subr.mxu0 0.0
    %141 = vmatpush1.msra.mxu0 0.0
    %142 = vmatprep.subr.mxu0 0.0
    %143 = vmatpush1.msra.mxu0 0.0
    %144 = vmatprep.subr.mxu0 0.0
    %145 = vmatpush1.msra.mxu0 0.0
    %146 = vmatprep.subr.mxu0 0.0
    %147 = vmatpush1.msra.mxu0 0.0
    %148 = vmatprep.subr.mxu0 0.0
    %149 = vmatpush1.msra.mxu0 0.0
    %150 = vmatprep.subr.mxu0 0.0
    %151 = vmatpush1.msra.mxu0 0.0
    %152 = vmatprep.subr.mxu0 0.0
    %153 = vmatpush1.msra.mxu0 0.0
    %154 = vmatprep.subr.mxu0 0.0
    %155 = vmatpush1.msra.mxu0 0.0
    %156 = vmatprep.subr.mxu0 0.0
    %157 = vmatpush1.msra.mxu0 0.0
    %158 = vmatprep.subr.mxu0 0.0
    %159 = vmatpush1.msra.mxu0 0.0
    %160 = vmatprep.subr.mxu0 0.0
    %161 = vmatpush1.msra.mxu0 0.0
    %162 = vmatprep.subr.mxu0 0.0
    %163 = vmatpush1.msra.mxu0 0.0
    %164 = vmatprep.subr.mxu0 0.0
    %165 = vmatpush1.msra.mxu0 0.0
    %166 = vmatprep.subr.mxu0 0.0
    %167 = vmatpush1.msra.mxu0 0.0
    %168 = vmatprep.subr.mxu0 0.0
    %169 = vmatpush1.msra.mxu0 0.0
    %170 = vmatprep.subr.mxu0 0.0
    %171 = vmatpush1.msra.mxu0 0.0
    %172 = vmatprep.subr.mxu0 0.0
    %173 = vmatpush1.msra.mxu0 0.0
    %174 = vmatprep.subr.mxu0 0.0
    %175 = vmatpush1.msra.mxu0 0.0
    %176 = vmatprep.subr.mxu0 0.0
    %177 = vmatpush1.msra.mxu0 0.0
    %178 = vmatprep.subr.mxu0 0.0
    %179 = vmatpush1.msra.mxu0 0.0
    %180 = vmatprep.subr.mxu0 0.0
    %181 = vmatpush1.msra.mxu0 0.0
    %182 = vmatprep.subr.mxu0 0.0
    %183 = vmatpush1.msra.mxu0 0.0
    %184 = vmatprep.subr.mxu0 0.0
    %185 = vmatpush1.msra.mxu0 0.0
    %186 = vmatprep.subr.mxu0 0.0
    %187 = vmatpush1.msra.mxu0 0.0
    %188 = vmatprep.subr.mxu0 0.0
    %189 = vmatpush1.msra.mxu0 0.0
    %190 = vmatprep.subr.mxu0 0.0
    %191 = vmatpush1.msra.mxu0 0.0
    %192 = vmatprep.subr.mxu0 0.0
    %193 = vmatpush1.msra.mxu0 0.0
    %194 = vmatprep.subr.mxu0 0.0
    %195 = vmatpush1.msra.mxu0 0.0
    %196 = vmatprep.mubr.f32.mxu0 0.0
    %197 = vmatmul.mubr.f32.gmra.mrb[0].mxu0 %v130
    %v198 = vpop.f32.mrb[0].mxu0
    %v199 = vadd.f32 0.0, %v198
    %v200 = vpop.f32.mrb[0].mxu0
    %201 = vdwg.mxu0
    %v203 = vrot.slane %v199, 7
    %v205 = vadd.f32 %v121, %v203
    %v206 = vtanh.pop %v205
    %v208 = vrot.slane %v206, 1
    %v209 = vsel %vm50, %v208, 0
    %211 = vmatprep.subr.mxu0 0.0
    %212 = vmatpush1.msra.mxu0 %v124
    %213 = vmatprep.subr.mxu0 0.0
    %214 = vmatpush1.msra.mxu0 %v125
    %215 = vmatprep.subr.mxu0 0.0
    %216 = vmatpush1.msra.mxu0 %v126
    %217 = vmatprep.subr.mxu0 0.0
    %218 = vmatpush1.msra.mxu0 %v127
    %219 = vmatprep.subr.mxu0 0.0
    %220 = vmatpush1.msra.mxu0 0.0
    %221 = vmatprep.subr.mxu0 0.0
    %222 = vmatpush1.msra.mxu0 0.0
    %223 = vmatprep.subr.mxu0 0.0
    %224 = vmatpush1.msra.mxu0 0.0
    %225 = vmatprep.subr.mxu0 0.0
    %226 = vmatpush1.msra.mxu0 0.0
    %227 = vmatprep.subr.mxu0 0.0
    %228 = vmatpush1.msra.mxu0 0.0
    %229 = vmatprep.subr.mxu0 0.0
    %230 = vmatpush1.msra.mxu0 0.0
    %231 = vmatprep.subr.mxu0 0.0
    %232 = vmatpush1.msra.mxu0 0.0
    %233 = vmatprep.subr.mxu0 0.0
    %234 = vmatpush1.msra.mxu0 0.0
    %235 = vmatprep.subr.mxu0 0.0
    %236 = vmatpush1.msra.mxu0 0.0
    %237 = vmatprep.subr.mxu0 0.0
    %238 = vmatpush1.msra.mxu0 0.0
    %239 = vmatprep.subr.mxu0 0.0
    %240 = vmatpush1.msra.mxu0 0.0
    %241 = vmatprep.subr.mxu0 0.0
    %242 = vmatpush1.msra.mxu0 0.0
    %243 = vmatprep.subr.mxu0 0.0
    %244 = vmatpush1.msra.mxu0 0.0
    %245 = vmatprep.subr.mxu0 0.0
    %246 = vmatpush1.msra.mxu0 0.0
    %247 = vmatprep.subr.mxu0 0.0
    %248 = vmatpush1.msra.mxu0 0.0
    %249 = vmatprep.subr.mxu0 0.0
    %250 = vmatpush1.msra.mxu0 0.0
    %251 = vmatprep.subr.mxu0 0.0
    %252 = vmatpush1.msra.mxu0 0.0
    %253 = vmatprep.subr.mxu0 0.0
    %254 = vmatpush1.msra.mxu0 0.0
    %255 = vmatprep.subr.mxu0 0.0
    %256 = vmatpush1.msra.mxu0 0.0
    %257 = vmatprep.subr.mxu0 0.0
    %258 = vmatpush1.msra.mxu0 0.0
    %259 = vmatprep.subr.mxu0 0.0
    %260 = vmatpush1.msra.mxu0 0.0
    %261 = vmatprep.subr.mxu0 0.0
    %262 = vmatpush1.msra.mxu0 0.0
    %263 = vmatprep.subr.mxu0 0.0
    %264 = vmatpush1.msra.mxu0 0.0
    %265 = vmatprep.subr.mxu0 0.0
    %266 = vmatpush1.msra.mxu0 0.0
    %267 = vmatprep.subr.mxu0 0.0
    %268 = vmatpush1.msra.mxu0 0.0
    %269 = vmatprep.subr.mxu0 0.0
    %270 = vmatpush1.msra.mxu0 0.0
    %271 = vmatprep.subr.mxu0 0.0
    %272 = vmatpush1.msra.mxu0 0.0
    %273 = vmatprep.subr.mxu0 0.0
    %274 = vmatpush1.msra.mxu0 0.0
    %275 = vmatprep.mubr.f32.mxu0 0.0
    %276 = vmatmul.mubr.f32.gmra.mrb[0].mxu0 %v209
    %v277 = vpop.f32.mrb[0].mxu0
    %v278 = vadd.f32 0.0, %v277
    %v279 = vpop.f32.mrb[0].mxu0
    %280 = vdwg.mxu0
    %v282 = vrot.slane %v278, 6
    %v284 = vadd.f32 %v121, %v282
    %v285 = vtanh.pop %v284
    %v287 = vrot.slane %v285, 2
    %v288 = vsel %vm50, %v287, 0
    %290 = vmatprep.subr.mxu0 0.0
    %291 = vmatpush1.msra.mxu0 %v124
    %292 = vmatprep.subr.mxu0 0.0
    %293 = vmatpush1.msra.mxu0 %v125
    %294 = vmatprep.subr.mxu0 0.0
    %295 = vmatpush1.msra.mxu0 %v126
    %296 = vmatprep.subr.mxu0 0.0
    %297 = vmatpush1.msra.mxu0 %v127
    %298 = vmatprep.subr.mxu0 0.0
    %299 = vmatpush1.msra.mxu0 0.0
    %300 = vmatprep.subr.mxu0 0.0
    %301 = vmatpush1.msra.mxu0 0.0
    %302 = vmatprep.subr.mxu0 0.0
    %303 = vmatpush1.msra.mxu0 0.0
    %304 = vmatprep.subr.mxu0 0.0
    %305 = vmatpush1.msra.mxu0 0.0
    %306 = vmatprep.subr.mxu0 0.0
    %307 = vmatpush1.msra.mxu0 0.0
    %308 = vmatprep.subr.mxu0 0.0
    %309 = vmatpush1.msra.mxu0 0.0
    %310 = vmatprep.subr.mxu0 0.0
    %311 = vmatpush1.msra.mxu0 0.0
    %312 = vmatprep.subr.mxu0 0.0
    %313 = vmatpush1.msra.mxu0 0.0
    %314 = vmatprep.subr.mxu0 0.0
    %315 = vmatpush1.msra.mxu0 0.0
    %316 = vmatprep.subr.mxu0 0.0
    %317 = vmatpush1.msra.mxu0 0.0
    %318 = vmatprep.subr.mxu0 0.0
    %319 = vmatpush1.msra.mxu0 0.0
    %320 = vmatprep.subr.mxu0 0.0
    %321 = vmatpush1.msra.mxu0 0.0
    %322 = vmatprep.subr.mxu0 0.0
    %323 = vmatpush1.msra.mxu0 0.0
    %324 = vmatprep.subr.mxu0 0.0
    %325 = vmatpush1.msra.mxu0 0.0
    %326 = vmatprep.subr.mxu0 0.0
    %327 = vmatpush1.msra.mxu0 0.0
    %328 = vmatprep.subr.mxu0 0.0
    %329 = vmatpush1.msra.mxu0 0.0
    %330 = vmatprep.subr.mxu0 0.0
    %331 = vmatpush1.msra.mxu0 0.0
    %332 = vmatprep.subr.mxu0 0.0
    %333 = vmatpush1.msra.mxu0 0.0
    %334 = vmatprep.subr.mxu0 0.0
    %335 = vmatpush1.msra.mxu0 0.0
    %336 = vmatprep.subr.mxu0 0.0
    %337 = vmatpush1.msra.mxu0 0.0
    %338 = vmatprep.subr.mxu0 0.0
    %339 = vmatpush1.msra.mxu0 0.0
    %340 = vmatprep.subr.mxu0 0.0
    %341 = vmatpush1.msra.mxu0 0.0
    %342 = vmatprep.subr.mxu0 0.0
    %343 = vmatpush1.msra.mxu0 0.0
    %344 = vmatprep.subr.mxu0 0.0
    %345 = vmatpush1.msra.mxu0 0.0
    %346 = vmatprep.subr.mxu0 0.0
    %347 = vmatpush1.msra.mxu0 0.0
    %348 = vmatprep.subr.mxu0 0.0
    %349 = vmatpush1.msra.mxu0 0.0
    %350 = vmatprep.subr.mxu0 0.0
    %351 = vmatpush1.msra.mxu0 0.0
    %352 = vmatprep.subr.mxu0 0.0
    %353 = vmatpush1.msra.mxu0 0.0
    %354 = vmatprep.mubr.f32.mxu0 0.0
    %355 = vmatmul.mubr.f32.gmra.mrb[0].mxu0 %v288
    %v356 = vpop.f32.mrb[0].mxu0
    %v357 = vadd.f32 0.0, %v356
    %v358 = vpop.f32.mrb[0].mxu0
    %359 = vdwg.mxu0
    %v361 = vrot.slane %v357, 5
    %v363 = vadd.f32 %v121, %v361
    %v364 = vtanh.pop %v363
    %v366 = vrot.slane %v364, 3
    %v367 = vsel %vm50, %v366, 0
    %369 = vmatprep.subr.mxu0 0.0
    %370 = vmatpush1.msra.mxu0 %v124
    %371 = vmatprep.subr.mxu0 0.0
    %372 = vmatpush1.msra.mxu0 %v125
    %373 = vmatprep.subr.mxu0 0.0
    %374 = vmatpush1.msra.mxu0 %v126
    %375 = vmatprep.subr.mxu0 0.0
    %376 = vmatpush1.msra.mxu0 %v127
    %377 = vmatprep.subr.mxu0 0.0
    %378 = vmatpush1.msra.mxu0 0.0
    %379 = vmatprep.subr.mxu0 0.0
    %380 = vmatpush1.msra.mxu0 0.0
    %381 = vmatprep.subr.mxu0 0.0
    %382 = vmatpush1.msra.mxu0 0.0
    %383 = vmatprep.subr.mxu0 0.0
    %384 = vmatpush1.msra.mxu0 0.0
    %385 = vmatprep.subr.mxu0 0.0
    %386 = vmatpush1.msra.mxu0 0.0
    %387 = vmatprep.subr.mxu0 0.0
    %388 = vmatpush1.msra.mxu0 0.0
    %389 = vmatprep.subr.mxu0 0.0
    %390 = vmatpush1.msra.mxu0 0.0
    %391 = vmatprep.subr.mxu0 0.0
    %392 = vmatpush1.msra.mxu0 0.0
    %393 = vmatprep.subr.mxu0 0.0
    %394 = vmatpush1.msra.mxu0 0.0
    %395 = vmatprep.subr.mxu0 0.0
    %396 = vmatpush1.msra.mxu0 0.0
    %397 = vmatprep.subr.mxu0 0.0
    %398 = vmatpush1.msra.mxu0 0.0
    %399 = vmatprep.subr.mxu0 0.0
    %400 = vmatpush1.msra.mxu0 0.0
    %401 = vmatprep.subr.mxu0 0.0
    %402 = vmatpush1.msra.mxu0 0.0
    %403 = vmatprep.subr.mxu0 0.0
    %404 = vmatpush1.msra.mxu0 0.0
    %405 = vmatprep.subr.mxu0 0.0
    %406 = vmatpush1.msra.mxu0 0.0
    %407 = vmatprep.subr.mxu0 0.0
    %408 = vmatpush1.msra.mxu0 0.0
    %409 = vmatprep.subr.mxu0 0.0
    %410 = vmatpush1.msra.mxu0 0.0
    %411 = vmatprep.subr.mxu0 0.0
    %412 = vmatpush1.msra.mxu0 0.0
    %413 = vmatprep.subr.mxu0 0.0
    %414 = vmatpush1.msra.mxu0 0.0
    %415 = vmatprep.subr.mxu0 0.0
    %416 = vmatpush1.msra.mxu0 0.0
    %417 = vmatprep.subr.mxu0 0.0
    %418 = vmatpush1.msra.mxu0 0.0
    %419 = vmatprep.subr.mxu0 0.0
    %420 = vmatpush1.msra.mxu0 0.0
    %421 = vmatprep.subr.mxu0 0.0
    %422 = vmatpush1.msra.mxu0 0.0
    %423 = vmatprep.subr.mxu0 0.0
    %424 = vmatpush1.msra.mxu0 0.0
    %425 = vmatprep.subr.mxu0 0.0
    %426 = vmatpush1.msra.mxu0 0.0
    %427 = vmatprep.subr.mxu0 0.0
    %428 = vmatpush1.msra.mxu0 0.0
    %429 = vmatprep.subr.mxu0 0.0
    %430 = vmatpush1.msra.mxu0 0.0
    %431 = vmatprep.subr.mxu0 0.0
    %432 = vmatpush1.msra.mxu0 0.0
    %433 = vmatprep.mubr.f32.mxu0 0.0
    %434 = vmatmul.mubr.f32.gmra.mrb[0].mxu0 %v367
    %v435 = vpop.f32.mrb[0].mxu0
    %v436 = vadd.f32 0.0, %v435
    %v437 = vpop.f32.mrb[0].mxu0
    %438 = vdwg.mxu0
    %v440 = vrot.slane %v436, 4
    %v442 = vadd.f32 %v121, %v440
    %v443 = vtanh.pop %v442
    %v445 = vrot.slane %v443, 4
    %v446 = vsel %vm50, %v445, 0
    %448 = vmatprep.subr.mxu0 0.0
    %449 = vmatpush1.msra.mxu0 %v124
    %450 = vmatprep.subr.mxu0 0.0
    %451 = vmatpush1.msra.mxu0 %v125
    %452 = vmatprep.subr.mxu0 0.0
    %453 = vmatpush1.msra.mxu0 %v126
    %454 = vmatprep.subr.mxu0 0.0
    %455 = vmatpush1.msra.mxu0 %v127
    %456 = vmatprep.subr.mxu0 0.0
    %457 = vmatpush1.msra.mxu0 0.0
    %458 = vmatprep.subr.mxu0 0.0
    %459 = vmatpush1.msra.mxu0 0.0
    %460 = vmatprep.subr.mxu0 0.0
    %461 = vmatpush1.msra.mxu0 0.0
    %462 = vmatprep.subr.mxu0 0.0
    %463 = vmatpush1.msra.mxu0 0.0
    %464 = vmatprep.subr.mxu0 0.0
    %465 = vmatpush1.msra.mxu0 0.0
    %466 = vmatprep.subr.mxu0 0.0
    %467 = vmatpush1.msra.mxu0 0.0
    %468 = vmatprep.subr.mxu0 0.0
    %469 = vmatpush1.msra.mxu0 0.0
    %470 = vmatprep.subr.mxu0 0.0
    %471 = vmatpush1.msra.mxu0 0.0
    %472 = vmatprep.subr.mxu0 0.0
    %473 = vmatpush1.msra.mxu0 0.0
    %474 = vmatprep.subr.mxu0 0.0
    %475 = vmatpush1.msra.mxu0 0.0
    %476 = vmatprep.subr.mxu0 0.0
    %477 = vmatpush1.msra.mxu0 0.0
    %478 = vmatprep.subr.mxu0 0.0
    %479 = vmatpush1.msra.mxu0 0.0
    %480 = vmatprep.subr.mxu0 0.0
    %481 = vmatpush1.msra.mxu0 0.0
    %482 = vmatprep.subr.mxu0 0.0
    %483 = vmatpush1.msra.mxu0 0.0
    %484 = vmatprep.subr.mxu0 0.0
    %485 = vmatpush1.msra.mxu0 0.0
    %486 = vmatprep.subr.mxu0 0.0
    %487 = vmatpush1.msra.mxu0 0.0
    %488 = vmatprep.subr.mxu0 0.0
    %489 = vmatpush1.msra.mxu0 0.0
    %490 = vmatprep.subr.mxu0 0.0
    %491 = vmatpush1.msra.mxu0 0.0
    %492 = vmatprep.subr.mxu0 0.0
    %493 = vmatpush1.msra.mxu0 0.0
    %494 = vmatprep.subr.mxu0 0.0
    %495 = vmatpush1.msra.mxu0 0.0
    %496 = vmatprep.subr.mxu0 0.0
    %497 = vmatpush1.msra.mxu0 0.0
    %498 = vmatprep.subr.mxu0 0.0
    %499 = vmatpush1.msra.mxu0 0.0
    %500 = vmatprep.subr.mxu0 0.0
    %501 = vmatpush1.msra.mxu0 0.0
    %502 = vmatprep.subr.mxu0 0.0
    %503 = vmatpush1.msra.mxu0 0.0
    %504 = vmatprep.subr.mxu0 0.0
    %505 = vmatpush1.msra.mxu0 0.0
    %506 = vmatprep.subr.mxu0 0.0
    %507 = vmatpush1.msra.mxu0 0.0
    %508 = vmatprep.subr.mxu0 0.0
    %509 = vmatpush1.msra.mxu0 0.0
    %510 = vmatprep.subr.mxu0 0.0
    %511 = vmatpush1.msra.mxu0 0.0
    %512 = vmatprep.mubr.f32.mxu0 0.0
    %513 = vmatmul.mubr.f32.gmra.mrb[0].mxu0 %v446
    %v514 = vpop.f32.mrb[0].mxu0
    %v515 = vadd.f32 0.0, %v514
    %v516 = vpop.f32.mrb[0].mxu0
    %517 = vdwg.mxu0
    %v519 = vrot.slane %v515, 3
    %v521 = vadd.f32 %v121, %v519
    %v522 = vtanh.pop %v521
    %v524 = vrot.slane %v522, 5
    %v525 = vsel %vm50, %v524, 0
    %527 = vmatprep.subr.mxu0 0.0
    %528 = vmatpush1.msra.mxu0 %v124
    %529 = vmatprep.subr.mxu0 0.0
    %530 = vmatpush1.msra.mxu0 %v125
    %531 = vmatprep.subr.mxu0 0.0
    %532 = vmatpush1.msra.mxu0 %v126
    %533 = vmatprep.subr.mxu0 0.0
    %534 = vmatpush1.msra.mxu0 %v127
    %535 = vmatprep.subr.mxu0 0.0
    %536 = vmatpush1.msra.mxu0 0.0
    %537 = vmatprep.subr.mxu0 0.0
    %538 = vmatpush1.msra.mxu0 0.0
    %539 = vmatprep.subr.mxu0 0.0
    %540 = vmatpush1.msra.mxu0 0.0
    %541 = vmatprep.subr.mxu0 0.0
    %542 = vmatpush1.msra.mxu0 0.0
    %543 = vmatprep.subr.mxu0 0.0
    %544 = vmatpush1.msra.mxu0 0.0
    %545 = vmatprep.subr.mxu0 0.0
    %546 = vmatpush1.msra.mxu0 0.0
    %547 = vmatprep.subr.mxu0 0.0
    %548 = vmatpush1.msra.mxu0 0.0
    %549 = vmatprep.subr.mxu0 0.0
    %550 = vmatpush1.msra.mxu0 0.0
    %551 = vmatprep.subr.mxu0 0.0
    %552 = vmatpush1.msra.mxu0 0.0
    %553 = vmatprep.subr.mxu0 0.0
    %554 = vmatpush1.msra.mxu0 0.0
    %555 = vmatprep.subr.mxu0 0.0
    %556 = vmatpush1.msra.mxu0 0.0
    %557 = vmatprep.subr.mxu0 0.0
    %558 = vmatpush1.msra.mxu0 0.0
    %559 = vmatprep.subr.mxu0 0.0
    %560 = vmatpush1.msra.mxu0 0.0
    %561 = vmatprep.subr.mxu0 0.0
    %562 = vmatpush1.msra.mxu0 0.0
    %563 = vmatprep.subr.mxu0 0.0
    %564 = vmatpush1.msra.mxu0 0.0
    %565 = vmatprep.subr.mxu0 0.0
    %566 = vmatpush1.msra.mxu0 0.0
    %567 = vmatprep.subr.mxu0 0.0
    %568 = vmatpush1.msra.mxu0 0.0
    %569 = vmatprep.subr.mxu0 0.0
    %570 = vmatpush1.msra.mxu0 0.0
    %571 = vmatprep.subr.mxu0 0.0
    %572 = vmatpush1.msra.mxu0 0.0
    %573 = vmatprep.subr.mxu0 0.0
    %574 = vmatpush1.msra.mxu0 0.0
    %575 = vmatprep.subr.mxu0 0.0
    %576 = vmatpush1.msra.mxu0 0.0
    %577 = vmatprep.subr.mxu0 0.0
    %578 = vmatpush1.msra.mxu0 0.0
    %579 = vmatprep.subr.mxu0 0.0
    %580 = vmatpush1.msra.mxu0 0.0
    %581 = vmatprep.subr.mxu0 0.0
    %582 = vmatpush1.msra.mxu0 0.0
    %583 = vmatprep.subr.mxu0 0.0
    %584 = vmatpush1.msra.mxu0 0.0
    %585 = vmatprep.subr.mxu0 0.0
    %586 = vmatpush1.msra.mxu0 0.0
    %587 = vmatprep.subr.mxu0 0.0
    %588 = vmatpush1.msra.mxu0 0.0
    %589 = vmatprep.subr.mxu0 0.0
    %590 = vmatpush1.msra.mxu0 0.0
    %591 = vmatprep.mubr.f32.mxu0 0.0
    %592 = vmatmul.mubr.f32.gmra.mrb[0].mxu0 %v525
    %v593 = vpop.f32.mrb[0].mxu0
    %v594 = vadd.f32 0.0, %v593
    %v595 = vpop.f32.mrb[0].mxu0
    %596 = vdwg.mxu0
    %v598 = vrot.slane %v594, 2
    %v600 = vadd.f32 %v121, %v598
    %v601 = vtanh.pop %v600
    %v603 = vrot.slane %v601, 6
    %v604 = vsel %vm50, %v603, 0
    %606 = vmatprep.subr.mxu0 0.0
    %607 = vmatpush1.msra.mxu0 %v124
    %608 = vmatprep.subr.mxu0 0.0
    %609 = vmatpush1.msra.mxu0 %v125
    %610 = vmatprep.subr.mxu0 0.0
    %611 = vmatpush1.msra.mxu0 %v126
    %612 = vmatprep.subr.mxu0 0.0
    %613 = vmatpush1.msra.mxu0 %v127
    %614 = vmatprep.subr.mxu0 0.0
    %615 = vmatpush1.msra.mxu0 0.0
    %616 = vmatprep.subr.mxu0 0.0
    %617 = vmatpush1.msra.mxu0 0.0
    %618 = vmatprep.subr.mxu0 0.0
    %619 = vmatpush1.msra.mxu0 0.0
    %620 = vmatprep.subr.mxu0 0.0
    %621 = vmatpush1.msra.mxu0 0.0
    %622 = vmatprep.subr.mxu0 0.0
    %623 = vmatpush1.msra.mxu0 0.0
    %624 = vmatprep.subr.mxu0 0.0
    %625 = vmatpush1.msra.mxu0 0.0
    %626 = vmatprep.subr.mxu0 0.0
    %627 = vmatpush1.msra.mxu0 0.0
    %628 = vmatprep.subr.mxu0 0.0
    %629 = vmatpush1.msra.mxu0 0.0
    %630 = vmatprep.subr.mxu0 0.0
    %631 = vmatpush1.msra.mxu0 0.0
    %632 = vmatprep.subr.mxu0 0.0
    %633 = vmatpush1.msra.mxu0 0.0
    %634 = vmatprep.subr.mxu0 0.0
    %635 = vmatpush1.msra.mxu0 0.0
    %636 = vmatprep.subr.mxu0 0.0
    %637 = vmatpush1.msra.mxu0 0.0
    %638 = vmatprep.subr.mxu0 0.0
    %639 = vmatpush1.msra.mxu0 0.0
    %640 = vmatprep.subr.mxu0 0.0
    %641 = vmatpush1.msra.mxu0 0.0
    %642 = vmatprep.subr.mxu0 0.0
    %643 = vmatpush1.msra.mxu0 0.0
    %644 = vmatprep.subr.mxu0 0.0
    %645 = vmatpush1.msra.mxu0 0.0
    %646 = vmatprep.subr.mxu0 0.0
    %647 = vmatpush1.msra.mxu0 0.0
    %648 = vmatprep.subr.mxu0 0.0
    %649 = vmatpush1.msra.mxu0 0.0
    %650 = vmatprep.subr.mxu0 0.0
    %651 = vmatpush1.msra.mxu0 0.0
    %652 = vmatprep.subr.mxu0 0.0
    %653 = vmatpush1.msra.mxu0 0.0
    %654 = vmatprep.subr.mxu0 0.0
    %655 = vmatpush1.msra.mxu0 0.0
    %656 = vmatprep.subr.mxu0 0.0
    %657 = vmatpush1.msra.mxu0 0.0
    %658 = vmatprep.subr.mxu0 0.0
    %659 = vmatpush1.msra.mxu0 0.0
    %660 = vmatprep.subr.mxu0 0.0
    %661 = vmatpush1.msra.mxu0 0.0
    %662 = vmatprep.subr.mxu0 0.0
    %663 = vmatpush1.msra.mxu0 0.0
    %664 = vmatprep.subr.mxu0 0.0
    %665 = vmatpush1.msra.mxu0 0.0
    %666 = vmatprep.subr.mxu0 0.0
    %667 = vmatpush1.msra.mxu0 0.0
    %668 = vmatprep.subr.mxu0 0.0
    %669 = vmatpush1.msra.mxu0 0.0
    %670 = vmatprep.mubr.f32.mxu0 0.0
    %671 = vmatmul.mubr.f32.gmra.mrb[0].mxu0 %v604
    %v672 = vpop.f32.mrb[0].mxu0
    %v673 = vadd.f32 0.0, %v672
    %v674 = vpop.f32.mrb[0].mxu0
    %675 = vdwg.mxu0
    %v677 = vrot.slane %v673, 1
    %v679 = vadd.f32 %v121, %v677
    %v680 = vtanh.pop %v679
    %v681 = vld [vmem:[%s4] sm:$0xff]
    %v682 = vld [vmem:[%s4 + $0x8] sm:$0xff]
    %v683 = vld [vmem:[%s4 + $0x10] sm:$0xff]
    %v684 = vld [vmem:[%s4 + $0x18] sm:$0xff]
    %v685 = vld [vmem:[%s5] sm:$0x1]
    %v687 = vrot.slane %v680, 7
    %v688 = vsel %vm50, %v687, 0
    %690 = vmatprep.subr.mxu0 0.0
    %691 = vmatpush1.msra.mxu0 %v681
    %692 = vmatprep.subr.mxu0 0.0
    %693 = vmatpush1.msra.mxu0 %v682
    %694 = vmatprep.subr.mxu0 0.0
    %695 = vmatpush1.msra.mxu0 %v683
    %696 = vmatprep.subr.mxu0 0.0
    %697 = vmatpush1.msra.mxu0 %v684
    %698 = vmatprep.subr.mxu0 0.0
    %699 = vmatpush1.msra.mxu0 0.0
    %700 = vmatprep.subr.mxu0 0.0
    %701 = vmatpush1.msra.mxu0 0.0
    %702 = vmatprep.subr.mxu0 0.0
    %703 = vmatpush1.msra.mxu0 0.0
    %704 = vmatprep.subr.mxu0 0.0
    %705 = vmatpush1.msra.mxu0 0.0
    %706 = vmatprep.subr.mxu0 0.0
    %707 = vmatpush1.msra.mxu0 0.0
    %708 = vmatprep.subr.mxu0 0.0
    %709 = vmatpush1.msra.mxu0 0.0
    %710 = vmatprep.subr.mxu0 0.0
    %711 = vmatpush1.msra.mxu0 0.0
    %712 = vmatprep.subr.mxu0 0.0
    %713 = vmatpush1.msra.mxu0 0.0
    %714 = vmatprep.subr.mxu0 0.0
    %715 = vmatpush1.msra.mxu0 0.0
    %716 = vmatprep.subr.mxu0 0.0
    %717 = vmatpush1.msra.mxu0 0.0
    %718 = vmatprep.subr.mxu0 0.0
    %719 = vmatpush1.msra.mxu0 0.0
    %720 = vmatprep.subr.mxu0 0.0
    %721 = vmatpush1.msra.mxu0 0.0
    %722 = vmatprep.subr.mxu0 0.0
    %723 = vmatpush1.msra.mxu0 0.0
    %724 = vmatprep.subr.mxu0 0.0
    %725 = vmatpush1.msra.mxu0 0.0
    %726 = vmatprep.subr.mxu0 0.0
    %727 = vmatpush1.msra.mxu0 0.0
    %728 = vmatprep.subr.mxu0 0.0
    %729 = vmatpush1.msra.mxu0 0.0
    %730 = vmatprep.subr.mxu0 0.0
    %731 = vmatpush1.msra.mxu0 0.0
    %732 = vmatprep.subr.mxu0 0.0
    %733 = vmatpush1.msra.mxu0 0.0
    %734 = vmatprep.subr.mxu0 0.0
    %735 = vmatpush1.msra.mxu0 0.0
    %736 = vmatprep.subr.mxu0 0.0
    %737 = vmatpush1.msra.mxu0 0.0
    %738 = vmatprep.subr.mxu0 0.0
    %739 = vmatpush1.msra.mxu0 0.0
    %740 = vmatprep.subr.mxu0 0.0
    %741 = vmatpush1.msra.mxu0 0.0
    %742 = vmatprep.subr.mxu0 0.0
    %743 = vmatpush1.msra.mxu0 0.0
    %744 = vmatprep.subr.mxu0 0.0
    %745 = vmatpush1.msra.mxu0 0.0
    %746 = vmatprep.subr.mxu0 0.0
    %747 = vmatpush1.msra.mxu0 0.0
    %748 = vmatprep.subr.mxu0 0.0
    %749 = vmatpush1.msra.mxu0 0.0
    %750 = vmatprep.subr.mxu0 0.0
    %751 = vmatpush1.msra.mxu0 0.0
    %752 = vmatprep.subr.mxu0 0.0
    %753 = vmatpush1.msra.mxu0 0.0
    %754 = vmatprep.mubr.f32.mxu0 0.0
    %755 = vmatmul.mubr.f32.gmra.mrb[0].mxu0 %v688
    %v756 = vpop.f32.mrb[0].mxu0
    %v757 = vadd.f32 %v685, %v756
    %v758 = vpop.f32.mrb[0].mxu0
    %759 = vdwg.mxu0
    %vm760 = vcmask 57344
    %761 = vst.msk [vmem:[#allocation5] sm:$0x1] %vm760, %v757
    // Predicated region
    $region30: #{tpu_custom_call.1} parent=1 // pred_check
      _
    $region31: #{tpu_custom_call.1} parent=1 // pred_check_branch
      %763 = sbr.rel (0) target = $region33
    $region32: #{tpu_custom_call.1} parent=1 // pred_region
      %s765 = ssub.s32 16, 16
      %766 = vsyncadd [#allocation4], %s765
      %s768 = sshll.u32 [#allocation5], 4
      %s769 = int_to_ptr.vmem [resolvable:$true] %s768
      %771 = dma.vmem_to_hbm [thread:$0]  %s769, 16, %s6, [#allocation4]
    $region33: #{tpu_custom_call.1} parent=1 // pred_fallthru
      _
    // Predicated region
    $region34: #{tpu_custom_call.1} parent=1 // pred_check
      _
    $region35: #{tpu_custom_call.1} parent=1 // pred_check_branch
      %773 = sbr.rel (0) target = $region37
    $region36: #{tpu_custom_call.1} parent=1 // pred_region
      %774 = dma.done [#allocation4], 16
    $region37: #{tpu_custom_call.1} parent=1 // pred_fallthru
      _
    %775 = vsyncpa [#allocation3], 1
    %776 = vsyncpa [#allocation4], 1

</llo_original>
